<compile_context>
chip_gen: v7x
topology: tpu7x:2x2x1
jax: 0.10.0
libtpu: 0.0.40
codegen_flags: <defaults>
</compile_context>

<pallas_src>
import jax
import jax.numpy as jnp
from jax import lax
from jax.experimental import pallas as pl
from jax.experimental.pallas import tpu as pltpu


def _resize_matrix(n_out: int, n_in: int) -> jnp.ndarray:
    """Matrix W (n_out, n_in) s.t. W @ x == bilinear resize of x along one axis
    with align_corners=True (PyTorch F.interpolate semantics)."""
    if n_out == 1:
        src = jnp.zeros((1,), dtype=jnp.float32)
    else:
        src = jnp.arange(n_out, dtype=jnp.float32) * ((n_in - 1) / (n_out - 1))
    i0 = jnp.clip(jnp.floor(src).astype(jnp.int32), 0, n_in - 1)
    i1 = jnp.clip(i0 + 1, 0, n_in - 1)
    frac = src - i0.astype(jnp.float32)
    w = (
        jax.nn.one_hot(i0, n_in, dtype=jnp.float32) * (1.0 - frac)[:, None]
        + jax.nn.one_hot(i1, n_in, dtype=jnp.float32) * frac[:, None]
    )
    return w  # (n_out, n_in)


def _l1_loss_kernel(wh_ref, wwt_ref, pred_ref, tgt_ref, out_ref):
    s = pl.program_id(1)

    @pl.when(s == 0)
    def _init():
        out_ref[...] = jnp.zeros_like(out_ref)

    tb, hin, win = tgt_ref.shape
    hout = wh_ref.shape[0]
    wout = wwt_ref.shape[1]

    t = tgt_ref[...].astype(jnp.float32)                      # (TB, Hin, Win)

    # W-resize: batch folded into the matmul M dimension (one big MXU matmul).
    tw = jnp.dot(t.reshape(tb * hin, win), wwt_ref[...],
                 preferred_element_type=jnp.float32)          # (TB*Hin, Wout)
    tw = tw.reshape(tb, hin, wout)

    # H-resize: batched matmul over the TB block.
    wh_b = jnp.broadcast_to(wh_ref[...].reshape(1, hout, hin), (tb, hout, hin))
    resized = lax.dot_general(
        wh_b, tw,
        dimension_numbers=(((2,), (1,)), ((0,), (0,))),
        preferred_element_type=jnp.float32)                   # (TB, Hout, Wout)

    diff = jnp.abs(pred_ref[...].astype(jnp.float32) - resized)

    # Elementwise (VPU) accumulation across the batch dim into the resident
    # output block; no per-step cross-lane reduce, no scalar RMW.
    out_ref[...] = out_ref[...] + jnp.sum(diff, axis=0, keepdims=True)


def l1_loss(prediction: jnp.ndarray, target: jnp.ndarray) -> jnp.ndarray:
    """Equivalent of:
       target = F.interpolate(target, size=prediction.shape[2:], mode='bilinear',
                              align_corners=True)
       return nn.L1Loss()(prediction, target)
    """
    N, C, Hout, Wout = prediction.shape
    Nt, Ct, Hin, Win = target.shape
    assert (N, C) == (Nt, Ct)
    B = N * C

    pred = prediction.reshape(B, Hout, Wout)
    tgt = target.reshape(B, Hin, Win)

    wh = _resize_matrix(Hout, Hin)          # (Hout, Hin)
    wwt = _resize_matrix(Wout, Win).T       # (Win, Wout), pre-transposed host-side

    # ---- batch-tile size: several MiB per step, safe on v5e/v6e/v7x VMEM ----
    bytes_per_img = 4 * (3 * Hout * Wout + 3 * Hin * Win
                         + Hin * Wout + Hout * Hin)
    budget = 16 * 1024 * 1024
    tb = min(B, max(1, budget // max(bytes_per_img, 1)), 1024)
    if tb >= 8:
        tb = (tb // 8) * 8

    n_blocks = -(-B // tb)                      # cdiv
    num_chunks = 2 if n_blocks >= 2 else 1      # per-core partial sums (v7x megacore)
    steps = -(-n_blocks // num_chunks)
    b_pad = num_chunks * steps * tb
    if b_pad != B:
        # Zero padding contributes exactly 0 to |pred - resize(tgt)|.
        pred = jnp.pad(pred, ((0, b_pad - B), (0, 0), (0, 0)))
        tgt = jnp.pad(tgt, ((0, b_pad - B), (0, 0), (0, 0)))

    partial = pl.pallas_call(
        _l1_loss_kernel,
        out_shape=jax.ShapeDtypeStruct((num_chunks, Hout, Wout), jnp.float32),
        grid_spec=pltpu.PrefetchScalarGridSpec(
            num_scalar_prefetch=0,
            grid=(num_chunks, steps),
            in_specs=[
                pl.BlockSpec((Hout, Hin), lambda c, s: (0, 0)),            # Wh
                pl.BlockSpec((Win, Wout), lambda c, s: (0, 0)),            # Ww^T
                pl.BlockSpec((tb, Hout, Wout),
                             lambda c, s: (c * steps + s, 0, 0)),          # pred block
                pl.BlockSpec((tb, Hin, Win),
                             lambda c, s: (c * steps + s, 0, 0)),          # target block
            ],
            out_specs=pl.BlockSpec((1, Hout, Wout), lambda c, s: (c, 0, 0)),
        ),
        compiler_params=pltpu.CompilerParams(
            dimension_semantics=("parallel", "arbitrary"),
            vmem_limit_bytes=48 * 1024 * 1024,
        ),
    )(wh, wwt, pred, tgt)

    total_count = float(N * C * Hout * Wout)
    # Single cross-lane reduce + mean finalize outside the kernel.
    return jnp.sum(partial) / total_count


def _reference(prediction, target):
    N, C, Hout, Wout = prediction.shape
    _, _, Hin, Win = target.shape
    wh = _resize_matrix(Hout, Hin)
    ww = _resize_matrix(Wout, Win)
    resized = jnp.einsum("oi,ncij,pj->ncop", wh, target.astype(jnp.float32), ww)
    return jnp.mean(jnp.abs(prediction.astype(jnp.float32) - resized))


if __name__ == "__main__":
    key = jax.random.PRNGKey(0)
    k1, k2 = jax.random.split(key)

    # prediction: (N=2, C=4, 16, 16); target at a different spatial size (8, 8)
    prediction = jax.random.normal(k1, (2, 4, 16, 16), dtype=jnp.float32)
    target = jax.random.normal(k2, (2, 4, 8, 8), dtype=jnp.float32)

    loss = l1_loss(prediction, target)
    jax.block_until_ready(loss)

    ref = _reference(prediction, target)
    assert jnp.allclose(loss, ref, atol=1e-5, rtol=1e-5), (loss, ref)

    print("KERNEL_OK")
</pallas_src>

<mosaic_0001>
module attributes {stable_mosaic.version = 11 : i64} {
  func.func @_l1_loss_kernel(%arg0: i32, %arg1: i32, %arg2: memref<16x8xf32, #tpu.memory_space<vmem>>, %arg3: memref<8x16xf32, #tpu.memory_space<vmem>>, %arg4: memref<8x16x16xf32, #tpu.memory_space<vmem>>, %arg5: memref<8x8x8xf32, #tpu.memory_space<vmem>>, %arg6: memref<1x16x16xf32, #tpu.memory_space<vmem>>) attributes {dimension_semantics = [#tpu.dimension_semantics<parallel>, #tpu.dimension_semantics<arbitrary>], iteration_bounds = array<i64: 1, 1>, scalar_prefetch = 0 : i64, scratch_operands = 0 : i64, tpu.core_type = #tpu.core_type<tc>, window_params = [{pipeline_mode = #tpu.pipeline_mode<synchronous>, transform_indices = @transform_0, window_bounds = array<i64: 16, 8>}, {pipeline_mode = #tpu.pipeline_mode<synchronous>, transform_indices = @transform_1, window_bounds = array<i64: 8, 16>}, {transform_indices = @transform_2, window_bounds = array<i64: 8, 16, 16>}, {transform_indices = @transform_3, window_bounds = array<i64: 8, 8, 8>}, {transform_indices = @transform_4, window_bounds = array<i64: 1, 16, 16>}]} {
    %c0_i32 = arith.constant 0 : i32
    %0 = arith.cmpi eq, %arg1, %c0_i32 : i32
    %1 = arith.extui %0 : i1 to i32
    %c0_i32_0 = arith.constant 0 : i32
    %2 = arith.cmpi ne, %1, %c0_i32_0 : i32
    scf.if %2 {
      %cst_18 = arith.constant 0.000000e+00 : f32
      %21 = vector.broadcast %cst_18 : f32 to vector<1x16x16xf32>
      %c0_19 = arith.constant 0 : index
      %c0_20 = arith.constant 0 : index
      %c0_21 = arith.constant 0 : index
      %22 = vector.load %arg6[%c0_19, %c0_20, %c0_21] : memref<1x16x16xf32, #tpu.memory_space<vmem>>, vector<1x16x16xf32>
      tpu.vector_store %arg6[%c0_19, %c0_20, %c0_21], %21 {strides = array<i32>} : memref<1x16x16xf32, #tpu.memory_space<vmem>>, vector<1x16x16xf32>,
    } else {
    }
    %c0 = arith.constant 0 : index
    %c0_1 = arith.constant 0 : index
    %c0_2 = arith.constant 0 : index
    %3 = vector.load %arg5[%c0, %c0_1, %c0_2] : memref<8x8x8xf32, #tpu.memory_space<vmem>>, vector<8x8x8xf32>
    %4 = vector.shape_cast %3 : vector<8x8x8xf32> to vector<64x8xf32>
    %c0_3 = arith.constant 0 : index
    %c0_4 = arith.constant 0 : index
    %5 = vector.load %arg3[%c0_3, %c0_4] : memref<8x16xf32, #tpu.memory_space<vmem>>, vector<8x16xf32>
    %cst = arith.constant dense<0.000000e+00> : vector<64x16xf32>
    %6 = tpu.matmul %4, %5, %cst {dimension_numbers = #tpu.dot_dimension_numbers<[1], [0], [0], [1], [0, 0, 1, 1], [], []>} : vector<64x8xf32>, vector<8x16xf32>, vector<64x16xf32> -> vector<64x16xf32>
    %7 = vector.shape_cast %6 : vector<64x16xf32> to vector<8x8x16xf32>
    %c0_5 = arith.constant 0 : index
    %c0_6 = arith.constant 0 : index
    %8 = vector.load %arg2[%c0_5, %c0_6] : memref<16x8xf32, #tpu.memory_space<vmem>>, vector<16x8xf32>
    %9 = vector.shape_cast %8 : vector<16x8xf32> to vector<1x16x8xf32>
    %10 = vector.shape_cast %9 : vector<1x16x8xf32> to vector<1x16x8xf32>
    %11 = vector.broadcast %10 : vector<1x16x8xf32> to vector<8x16x8xf32>
    %cst_7 = arith.constant dense<0.000000e+00> : vector<8x16x16xf32>
    %12 = tpu.matmul %11, %7, %cst_7 {dimension_numbers = #tpu.dot_dimension_numbers<[2], [1], [1], [2], [0, 0, 0, 1, 1, 2], [0], [0]>} : vector<8x16x8xf32>, vector<8x8x16xf32>, vector<8x16x16xf32> -> vector<8x16x16xf32>
    %c0_8 = arith.constant 0 : index
    %c0_9 = arith.constant 0 : index
    %c0_10 = arith.constant 0 : index
    %13 = vector.load %arg4[%c0_8, %c0_9, %c0_10] : memref<8x16x16xf32, #tpu.memory_space<vmem>>, vector<8x16x16xf32>
    %14 = arith.subf %13, %12 : vector<8x16x16xf32>
    %15 = math.absf %14 : vector<8x16x16xf32>
    %c0_11 = arith.constant 0 : index
    %c0_12 = arith.constant 0 : index
    %c0_13 = arith.constant 0 : index
    %16 = vector.load %arg6[%c0_11, %c0_12, %c0_13] : memref<1x16x16xf32, #tpu.memory_space<vmem>>, vector<1x16x16xf32>
    %cst_14 = arith.constant dense<0.000000e+00> : vector<16x16xf32>
    %17 = vector.multi_reduction <add>, %15, %cst_14 [0] : vector<8x16x16xf32> to vector<16x16xf32>
    %18 = vector.shape_cast %17 : vector<16x16xf32> to vector<1x16x16xf32>
    %19 = arith.addf %16, %18 : vector<1x16x16xf32>
    %c0_15 = arith.constant 0 : index
    %c0_16 = arith.constant 0 : index
    %c0_17 = arith.constant 0 : index
    %20 = vector.load %arg6[%c0_15, %c0_16, %c0_17] : memref<1x16x16xf32, #tpu.memory_space<vmem>>, vector<1x16x16xf32>
    tpu.vector_store %arg6[%c0_15, %c0_16, %c0_17], %19 {strides = array<i32>} : memref<1x16x16xf32, #tpu.memory_space<vmem>>, vector<1x16x16xf32>,
    return
  }
  func.func @transform_0(%arg0: i32, %arg1: i32) -> (i32, i32) {
    %c0_i32 = arith.constant 0 : i32
    %c0_i32_0 = arith.constant 0 : i32
    %c0_i32_1 = arith.constant 0 : i32
    return %c0_i32, %c0_i32_0 : i32, i32
  }
  func.func @transform_1(%arg0: i32, %arg1: i32) -> (i32, i32) {
    %c0_i32 = arith.constant 0 : i32
    %c0_i32_0 = arith.constant 0 : i32
    %c0_i32_1 = arith.constant 0 : i32
    return %c0_i32, %c0_i32_0 : i32, i32
  }
  func.func @transform_2(%arg0: i32, %arg1: i32) -> (i32, i32, i32) {
    %c1_i32 = arith.constant 1 : i32
    %0 = arith.muli %arg0, %c1_i32 : i32
    %1 = arith.addi %0, %arg1 : i32
    %c0_i32 = arith.constant 0 : i32
    %c0_i32_0 = arith.constant 0 : i32
    %c0_i32_1 = arith.constant 0 : i32
    return %1, %c0_i32, %c0_i32_0 : i32, i32, i32
  }
  func.func @transform_3(%arg0: i32, %arg1: i32) -> (i32, i32, i32) {
    %c1_i32 = arith.constant 1 : i32
    %0 = arith.muli %arg0, %c1_i32 : i32
    %1 = arith.addi %0, %arg1 : i32
    %c0_i32 = arith.constant 0 : i32
    %c0_i32_0 = arith.constant 0 : i32
    %c0_i32_1 = arith.constant 0 : i32
    return %1, %c0_i32, %c0_i32_0 : i32, i32, i32
  }
  func.func @transform_4(%arg0: i32, %arg1: i32) -> (i32, i32, i32) {
    %c0_i32 = arith.constant 0 : i32
    %c0_i32_0 = arith.constant 0 : i32
    %c0_i32_1 = arith.constant 0 : i32
    return %arg0, %c0_i32, %c0_i32_0 : i32, i32, i32
  }
}

</mosaic_0001>

<llo_original>
// kernel: tpu_custom_call.1
$region0: #{tpu_custom_call.1}
  #allocation0 [shape = 'u32[]', space=smem, size = 0x4, offset = 0x4, fixed_abs, tag = 'smem constant byte address 0x4 - core index']
  #allocation1 [shape = 'u32[144,128]{1,0:T(1,128)}', space=vmem, size = 0x12000, scoped, tag = 'internal scratch']
  %s0 = inlined_call_operand.vmem [shape: f32[16,8], index: 0, kind: input, shape index: {}]
  %s1 = inlined_call_operand.vmem [shape: f32[8,16], index: 1, kind: input, shape index: {}]
  %s2 = inlined_call_operand.hbm [shape: f32[8,16,16], index: 2, kind: input, shape index: {}]
  %s3 = inlined_call_operand.hbm [shape: f32[8,8,8], index: 3, kind: input, shape index: {}]
  %s4 = inlined_call_operand.hbm [shape: f32[1,16,16], index: 4, kind: output, shape index: {}]
  %s5 = sld [smem:[#allocation0]]
  $region38: #{tpu_custom_call.1} parent=0
    _
  %s7 = ssub.s32 1, %s5
  %s8 = scalar_select 0, %s7, %s5
  $region1: #{tpu_custom_call.1} parent=0
    #allocation2 [shape = 'u8[65536]{0}', space=vmem, size = 0x10000, scoped, tag = 'input window, operand 2, single buffered']
    #allocation3 [shape = 's32[1]{0}', space=sflag, size = 0x4, scoped, tag = 'scoped memory for tpu_custom_call.1']
    #allocation4 [shape = 's32[1]{0}', space=sflag, size = 0x4, scoped, tag = 'scoped memory for tpu_custom_call.1']
    #allocation5 [shape = 'u8[32768]{0}', space=vmem, size = 0x8000, scoped, tag = 'input window, operand 3, single buffered']
    #allocation6 [shape = 's32[1]{0}', space=sflag, size = 0x4, scoped, tag = 'scoped memory for tpu_custom_call.1']
    #allocation7 [shape = 'u8[8192]{0}', space=vmem, size = 0x2000, scoped, tag = 'output window, operand 0, single buffered']
    %9 = vsyncpa [#allocation3], 0
    %10 = vsyncpa [#allocation6], 0
    %11 = vsyncpa [#allocation4], 0
    // Predicated region
    $region2: #{tpu_custom_call.1} parent=1 // pred_check
      _
    $region3: #{tpu_custom_call.1} parent=1 // pred_check_branch
      %13 = sbr.rel (0) target = $region5
    $region4: #{tpu_custom_call.1} parent=1 // pred_region
      _
    $region5: #{tpu_custom_call.1} parent=1 // pred_fallthru
      _
    // Predicated region
    $region6: #{tpu_custom_call.1} parent=1 // pred_check
      _
    $region7: #{tpu_custom_call.1} parent=1 // pred_check_branch
      %15 = sbr.rel (0) target = $region9
    $region8: #{tpu_custom_call.1} parent=1 // pred_region
      _
    $region9: #{tpu_custom_call.1} parent=1 // pred_fallthru
      _
    // Predicated region
    $region10: #{tpu_custom_call.1} parent=1 // pred_check
      _
    $region11: #{tpu_custom_call.1} parent=1 // pred_check_branch
      %17 = sbr.rel (0) target = $region13
    $region12: #{tpu_custom_call.1} parent=1 // pred_region
      %s18 = sadd.s32 0, 0
      %s19 = smul.u32 8, %s18
      %s21 = ssub.s32 2048, 2048
      %22 = vsyncadd [#allocation3], %s21
      %s23 = smul.addr %s19, 2
      %s24 = smul.addr %s23, 128
      %s25 = scalar_lea.hbm %s2, %s24
      %s26 = sshll.u32 [#allocation2], 4
      %s27 = int_to_ptr.vmem [resolvable:$true] %s26
      %32 = dma.hbm_to_vmem [thread:$0]  %s25, 2048, %s27, [#allocation3], 128, 128, 8
    $region13: #{tpu_custom_call.1} parent=1 // pred_fallthru
      _
    // Predicated region
    $region14: #{tpu_custom_call.1} parent=1 // pred_check
      _
    $region15: #{tpu_custom_call.1} parent=1 // pred_check_branch
      %34 = sbr.rel (0) target = $region17
    $region16: #{tpu_custom_call.1} parent=1 // pred_region
      %s35 = sadd.s32 0, 0
      %s36 = smul.u32 8, %s35
      %s38 = ssub.s32 1024, 1024
      %39 = vsyncadd [#allocation6], %s38
      %s40 = smul.addr %s36, 128
      %s41 = scalar_lea.hbm %s3, %s40
      %s42 = sshll.u32 [#allocation5], 4
      %s43 = int_to_ptr.vmem [resolvable:$true] %s42
      %48 = dma.hbm_to_vmem [thread:$0]  %s41, 1024, %s43, [#allocation6], 128, 128, 8
    $region17: #{tpu_custom_call.1} parent=1 // pred_fallthru
      _
    // Predicated region
    $region18: #{tpu_custom_call.1} parent=1 // pred_check
      _
    $region19: #{tpu_custom_call.1} parent=1 // pred_check_branch
      %50 = sbr.rel (0) target = $region21
    $region20: #{tpu_custom_call.1} parent=1 // pred_region
      %51 = dma.done [#allocation3], 2048
    $region21: #{tpu_custom_call.1} parent=1 // pred_fallthru
      _
    // Predicated region
    $region22: #{tpu_custom_call.1} parent=1 // pred_check
      _
    $region23: #{tpu_custom_call.1} parent=1 // pred_check_branch
      %53 = sbr.rel (0) target = $region25
    $region24: #{tpu_custom_call.1} parent=1 // pred_region
      %54 = dma.done [#allocation6], 1024
    $region25: #{tpu_custom_call.1} parent=1 // pred_fallthru
      _
    %s55 = sadd.s32 0, 0
    %s56 = smul.u32 8, %s55
    %s57 = sadd.s32 0, 0
    %s58 = smul.u32 8, %s57
    %p59 = scmp.eq.s32.totalorder 0, 0
    // Predicated region
    $region26: #{tpu_custom_call.1} parent=1 // pred_check
      %p60 = pneg %p59
    $region27: #{tpu_custom_call.1} parent=1 // pred_check_branch
      %62 = sbr.rel (%p60) target = $region29
    $region28: #{tpu_custom_call.1} parent=1 // pred_region
      %vm63 = vcmask 130048
      %64 = vst.msk [vmem:[#allocation7] sm:$0xff] %vm63, 0.0
      %65 = vst.msk [vmem:[#allocation7 + $0x8] sm:$0xff] %vm63, 0.0
    $region29: #{tpu_custom_call.1} parent=1 // pred_fallthru
      _
    %v66 = vld [vmem:[#allocation5] sm:$0xff]
    %v67 = vld [vmem:[#allocation5 + $0x8] sm:$0xff]
    %v68 = vld [vmem:[#allocation5 + $0x10] sm:$0xff]
    %v69 = vld [vmem:[#allocation5 + $0x18] sm:$0xff]
    %v70 = vld [vmem:[#allocation5 + $0x20] sm:$0xff]
    %v71 = vld [vmem:[#allocation5 + $0x28] sm:$0xff]
    %v72 = vld [vmem:[#allocation5 + $0x30] sm:$0xff]
    %v73 = vld [vmem:[#allocation5 + $0x38] sm:$0xff]
    %v74 = vld [vmem:[%s1] sm:$0xff]
    %vm75 = vcmask 64512
    %v77 = vsel %vm75, %v66, 0
    %v80 = vsel %vm75, %v67, 0
    %v83 = vsel %vm75, %v68, 0
    %v86 = vsel %vm75, %v69, 0
    %v89 = vsel %vm75, %v70, 0
    %v92 = vsel %vm75, %v71, 0
    %v95 = vsel %vm75, %v72, 0
    %v98 = vsel %vm75, %v73, 0
    %100 = vmatprep.subr.mxu0 0.0
    %101 = vmatpush1.msra.mxu0 %v74
    %102 = vmatprep.subr.mxu0 0.0
    %103 = vmatpush1.msra.mxu0 0.0
    %104 = vmatprep.subr.mxu0 0.0
    %105 = vmatpush1.msra.mxu0 0.0
    %106 = vmatprep.subr.mxu0 0.0
    %107 = vmatpush1.msra.mxu0 0.0
    %108 = vmatprep.subr.mxu0 0.0
    %109 = vmatpush1.msra.mxu0 0.0
    %110 = vmatprep.subr.mxu0 0.0
    %111 = vmatpush1.msra.mxu0 0.0
    %112 = vmatprep.subr.mxu0 0.0
    %113 = vmatpush1.msra.mxu0 0.0
    %114 = vmatprep.subr.mxu0 0.0
    %115 = vmatpush1.msra.mxu0 0.0
    %116 = vmatprep.subr.mxu0 0.0
    %117 = vmatpush1.msra.mxu0 0.0
    %118 = vmatprep.subr.mxu0 0.0
    %119 = vmatpush1.msra.mxu0 0.0
    %120 = vmatprep.subr.mxu0 0.0
    %121 = vmatpush1.msra.mxu0 0.0
    %122 = vmatprep.subr.mxu0 0.0
    %123 = vmatpush1.msra.mxu0 0.0
    %124 = vmatprep.subr.mxu0 0.0
    %125 = vmatpush1.msra.mxu0 0.0
    %126 = vmatprep.subr.mxu0 0.0
    %127 = vmatpush1.msra.mxu0 0.0
    %128 = vmatprep.subr.mxu0 0.0
    %129 = vmatpush1.msra.mxu0 0.0
    %130 = vmatprep.subr.mxu0 0.0
    %131 = vmatpush1.msra.mxu0 0.0
    %132 = vmatprep.subr.mxu0 0.0
    %133 = vmatpush1.msra.mxu0 0.0
    %134 = vmatprep.subr.mxu0 0.0
    %135 = vmatpush1.msra.mxu0 0.0
    %136 = vmatprep.subr.mxu0 0.0
    %137 = vmatpush1.msra.mxu0 0.0
    %138 = vmatprep.subr.mxu0 0.0
    %139 = vmatpush1.msra.mxu0 0.0
    %140 = vmatprep.subr.mxu0 0.0
    %141 = vmatpush1.msra.mxu0 0.0
    %142 = vmatprep.subr.mxu0 0.0
    %143 = vmatpush1.msra.mxu0 0.0
    %144 = vmatprep.subr.mxu0 0.0
    %145 = vmatpush1.msra.mxu0 0.0
    %146 = vmatprep.subr.mxu0 0.0
    %147 = vmatpush1.msra.mxu0 0.0
    %148 = vmatprep.subr.mxu0 0.0
    %149 = vmatpush1.msra.mxu0 0.0
    %150 = vmatprep.subr.mxu0 0.0
    %151 = vmatpush1.msra.mxu0 0.0
    %152 = vmatprep.subr.mxu0 0.0
    %153 = vmatpush1.msra.mxu0 0.0
    %154 = vmatprep.subr.mxu0 0.0
    %155 = vmatpush1.msra.mxu0 0.0
    %156 = vmatprep.subr.mxu0 0.0
    %157 = vmatpush1.msra.mxu0 0.0
    %158 = vmatprep.subr.mxu0 0.0
    %159 = vmatpush1.msra.mxu0 0.0
    %160 = vmatprep.subr.mxu0 0.0
    %161 = vmatpush1.msra.mxu0 0.0
    %162 = vmatprep.subr.mxu0 0.0
    %163 = vmatpush1.msra.mxu0 0.0
    %164 = vmatprep.mubr.f32.mxu0 0.0
    %165 = vmatmul.mubr.f32.gmra.mrb[0].mxu0 %v77
    %v166 = vpop.f32.mrb[0].mxu0
    %v167 = vadd.f32 0.0, %v166
    %v168 = vpop.f32.mrb[0].mxu0
    %169 = vmatprep.mubr.f32.mxu0 0.0
    %170 = vmatmul.mubr.f32.gmra.mrb[0].mxu0 %v80
    %v171 = vpop.f32.mrb[0].mxu0
    %v172 = vadd.f32 0.0, %v171
    %v173 = vpop.f32.mrb[0].mxu0
    %174 = vmatprep.mubr.f32.mxu0 0.0
    %175 = vmatmul.mubr.f32.gmra.mrb[0].mxu0 %v83
    %v176 = vpop.f32.mrb[0].mxu0
    %v177 = vadd.f32 0.0, %v176
    %v178 = vpop.f32.mrb[0].mxu0
    %179 = vmatprep.mubr.f32.mxu0 0.0
    %180 = vmatmul.mubr.f32.gmra.mrb[0].mxu0 %v86
    %v181 = vpop.f32.mrb[0].mxu0
    %v182 = vadd.f32 0.0, %v181
    %v183 = vpop.f32.mrb[0].mxu0
    %184 = vmatprep.mubr.f32.mxu0 0.0
    %185 = vmatmul.mubr.f32.gmra.mrb[0].mxu0 %v89
    %v186 = vpop.f32.mrb[0].mxu0
    %v187 = vadd.f32 0.0, %v186
    %v188 = vpop.f32.mrb[0].mxu0
    %189 = vmatprep.mubr.f32.mxu0 0.0
    %190 = vmatmul.mubr.f32.gmra.mrb[0].mxu0 %v92
    %v191 = vpop.f32.mrb[0].mxu0
    %v192 = vadd.f32 0.0, %v191
    %v193 = vpop.f32.mrb[0].mxu0
    %194 = vmatprep.mubr.f32.mxu0 0.0
    %195 = vmatmul.mubr.f32.gmra.mrb[0].mxu0 %v95
    %v196 = vpop.f32.mrb[0].mxu0
    %v197 = vadd.f32 0.0, %v196
    %v198 = vpop.f32.mrb[0].mxu0
    %199 = vmatprep.mubr.f32.mxu0 0.0
    %200 = vmatmul.mubr.f32.gmra.mrb[0].mxu0 %v98
    %v201 = vpop.f32.mrb[0].mxu0
    %v202 = vadd.f32 0.0, %v201
    %v203 = vpop.f32.mrb[0].mxu0
    %204 = vdwg.mxu0
    %v205 = vld [vmem:[%s0] sm:$0xff]
    %v206 = vld [vmem:[%s0 + $0x8] sm:$0xff]
    %v208 = vsel %vm75, %v205, 0
    %v211 = vsel %vm75, %v206, 0
    %213 = vmatprep.subr.mxu0 0.0
    %214 = vmatpush1.msra.mxu0 %v167
    %215 = vmatprep.subr.mxu0 0.0
    %216 = vmatpush1.msra.mxu0 0.0
    %217 = vmatprep.subr.mxu0 0.0
    %218 = vmatpush1.msra.mxu0 0.0
    %219 = vmatprep.subr.mxu0 0.0
    %220 = vmatpush1.msra.mxu0 0.0
    %221 = vmatprep.subr.mxu0 0.0
    %222 = vmatpush1.msra.mxu0 0.0
    %223 = vmatprep.subr.mxu0 0.0
    %224 = vmatpush1.msra.mxu0 0.0
    %225 = vmatprep.subr.mxu0 0.0
    %226 = vmatpush1.msra.mxu0 0.0
    %227 = vmatprep.subr.mxu0 0.0
    %228 = vmatpush1.msra.mxu0 0.0
    %229 = vmatprep.subr.mxu0 0.0
    %230 = vmatpush1.msra.mxu0 0.0
    %231 = vmatprep.subr.mxu0 0.0
    %232 = vmatpush1.msra.mxu0 0.0
    %233 = vmatprep.subr.mxu0 0.0
    %234 = vmatpush1.msra.mxu0 0.0
    %235 = vmatprep.subr.mxu0 0.0
    %236 = vmatpush1.msra.mxu0 0.0
    %237 = vmatprep.subr.mxu0 0.0
    %238 = vmatpush1.msra.mxu0 0.0
    %239 = vmatprep.subr.mxu0 0.0
    %240 = vmatpush1.msra.mxu0 0.0
    %241 = vmatprep.subr.mxu0 0.0
    %242 = vmatpush1.msra.mxu0 0.0
    %243 = vmatprep.subr.mxu0 0.0
    %244 = vmatpush1.msra.mxu0 0.0
    %245 = vmatprep.subr.mxu0 0.0
    %246 = vmatpush1.msra.mxu0 0.0
    %247 = vmatprep.subr.mxu0 0.0
    %248 = vmatpush1.msra.mxu0 0.0
    %249 = vmatprep.subr.mxu0 0.0
    %250 = vmatpush1.msra.mxu0 0.0
    %251 = vmatprep.subr.mxu0 0.0
    %252 = vmatpush1.msra.mxu0 0.0
    %253 = vmatprep.subr.mxu0 0.0
    %254 = vmatpush1.msra.mxu0 0.0
    %255 = vmatprep.subr.mxu0 0.0
    %256 = vmatpush1.msra.mxu0 0.0
    %257 = vmatprep.subr.mxu0 0.0
    %258 = vmatpush1.msra.mxu0 0.0
    %259 = vmatprep.subr.mxu0 0.0
    %260 = vmatpush1.msra.mxu0 0.0
    %261 = vmatprep.subr.mxu0 0.0
    %262 = vmatpush1.msra.mxu0 0.0
    %263 = vmatprep.subr.mxu0 0.0
    %264 = vmatpush1.msra.mxu0 0.0
    %265 = vmatprep.subr.mxu0 0.0
    %266 = vmatpush1.msra.mxu0 0.0
    %267 = vmatprep.subr.mxu0 0.0
    %268 = vmatpush1.msra.mxu0 0.0
    %269 = vmatprep.subr.mxu0 0.0
    %270 = vmatpush1.msra.mxu0 0.0
    %271 = vmatprep.subr.mxu0 0.0
    %272 = vmatpush1.msra.mxu0 0.0
    %273 = vmatprep.subr.mxu0 0.0
    %274 = vmatpush1.msra.mxu0 0.0
    %275 = vmatprep.subr.mxu0 0.0
    %276 = vmatpush1.msra.mxu0 0.0
    %277 = vmatprep.mubr.f32.mxu0 0.0
    %278 = vmatmul.mubr.f32.gmra.mrb[0].mxu0 %v208
    %v279 = vpop.f32.mrb[0].mxu0
    %v280 = vadd.f32 0.0, %v279
    %v281 = vpop.f32.mrb[0].mxu0
    %282 = vmatprep.mubr.f32.mxu0 0.0
    %283 = vmatmul.mubr.f32.gmra.mrb[0].mxu0 %v211
    %v284 = vpop.f32.mrb[0].mxu0
    %v285 = vadd.f32 0.0, %v284
    %v286 = vpop.f32.mrb[0].mxu0
    %287 = vdwg.mxu0
    %288 = vmatprep.subr.mxu0 0.0
    %289 = vmatpush1.msra.mxu0 %v172
    %290 = vmatprep.subr.mxu0 0.0
    %291 = vmatpush1.msra.mxu0 0.0
    %292 = vmatprep.subr.mxu0 0.0
    %293 = vmatpush1.msra.mxu0 0.0
    %294 = vmatprep.subr.mxu0 0.0
    %295 = vmatpush1.msra.mxu0 0.0
    %296 = vmatprep.subr.mxu0 0.0
    %297 = vmatpush1.msra.mxu0 0.0
    %298 = vmatprep.subr.mxu0 0.0
    %299 = vmatpush1.msra.mxu0 0.0
    %300 = vmatprep.subr.mxu0 0.0
    %301 = vmatpush1.msra.mxu0 0.0
    %302 = vmatprep.subr.mxu0 0.0
    %303 = vmatpush1.msra.mxu0 0.0
    %304 = vmatprep.subr.mxu0 0.0
    %305 = vmatpush1.msra.mxu0 0.0
    %306 = vmatprep.subr.mxu0 0.0
    %307 = vmatpush1.msra.mxu0 0.0
    %308 = vmatprep.subr.mxu0 0.0
    %309 = vmatpush1.msra.mxu0 0.0
    %310 = vmatprep.subr.mxu0 0.0
    %311 = vmatpush1.msra.mxu0 0.0
    %312 = vmatprep.subr.mxu0 0.0
    %313 = vmatpush1.msra.mxu0 0.0
    %314 = vmatprep.subr.mxu0 0.0
    %315 = vmatpush1.msra.mxu0 0.0
    %316 = vmatprep.subr.mxu0 0.0
    %317 = vmatpush1.msra.mxu0 0.0
    %318 = vmatprep.subr.mxu0 0.0
    %319 = vmatpush1.msra.mxu0 0.0
    %320 = vmatprep.subr.mxu0 0.0
    %321 = vmatpush1.msra.mxu0 0.0
    %322 = vmatprep.subr.mxu0 0.0
    %323 = vmatpush1.msra.mxu0 0.0
    %324 = vmatprep.subr.mxu0 0.0
    %325 = vmatpush1.msra.mxu0 0.0
    %326 = vmatprep.subr.mxu0 0.0
    %327 = vmatpush1.msra.mxu0 0.0
    %328 = vmatprep.subr.mxu0 0.0
    %329 = vmatpush1.msra.mxu0 0.0
    %330 = vmatprep.subr.mxu0 0.0
    %331 = vmatpush1.msra.mxu0 0.0
    %332 = vmatprep.subr.mxu0 0.0
    %333 = vmatpush1.msra.mxu0 0.0
    %334 = vmatprep.subr.mxu0 0.0
    %335 = vmatpush1.msra.mxu0 0.0
    %336 = vmatprep.subr.mxu0 0.0
    %337 = vmatpush1.msra.mxu0 0.0
    %338 = vmatprep.subr.mxu0 0.0
    %339 = vmatpush1.msra.mxu0 0.0
    %340 = vmatprep.subr.mxu0 0.0
    %341 = vmatpush1.msra.mxu0 0.0
    %342 = vmatprep.subr.mxu0 0.0
    %343 = vmatpush1.msra.mxu0 0.0
    %344 = vmatprep.subr.mxu0 0.0
    %345 = vmatpush1.msra.mxu0 0.0
    %346 = vmatprep.subr.mxu0 0.0
    %347 = vmatpush1.msra.mxu0 0.0
    %348 = vmatprep.subr.mxu0 0.0
    %349 = vmatpush1.msra.mxu0 0.0
    %350 = vmatprep.subr.mxu0 0.0
    %351 = vmatpush1.msra.mxu0 0.0
    %352 = vmatprep.mubr.f32.mxu0 0.0
    %353 = vmatmul.mubr.f32.gmra.mrb[0].mxu0 %v208
    %v354 = vpop.f32.mrb[0].mxu0
    %v355 = vadd.f32 0.0, %v354
    %v356 = vpop.f32.mrb[0].mxu0
    %357 = vmatprep.mubr.f32.mxu0 0.0
    %358 = vmatmul.mubr.f32.gmra.mrb[0].mxu0 %v211
    %v359 = vpop.f32.mrb[0].mxu0
    %v360 = vadd.f32 0.0, %v359
    %v361 = vpop.f32.mrb[0].mxu0
    %362 = vdwg.mxu0
    %363 = vmatprep.subr.mxu0 0.0
    %364 = vmatpush1.msra.mxu0 %v177
    %365 = vmatprep.subr.mxu0 0.0
    %366 = vmatpush1.msra.mxu0 0.0
    %367 = vmatprep.subr.mxu0 0.0
    %368 = vmatpush1.msra.mxu0 0.0
    %369 = vmatprep.subr.mxu0 0.0
    %370 = vmatpush1.msra.mxu0 0.0
    %371 = vmatprep.subr.mxu0 0.0
    %372 = vmatpush1.msra.mxu0 0.0
    %373 = vmatprep.subr.mxu0 0.0
    %374 = vmatpush1.msra.mxu0 0.0
    %375 = vmatprep.subr.mxu0 0.0
    %376 = vmatpush1.msra.mxu0 0.0
    %377 = vmatprep.subr.mxu0 0.0
    %378 = vmatpush1.msra.mxu0 0.0
    %379 = vmatprep.subr.mxu0 0.0
    %380 = vmatpush1.msra.mxu0 0.0
    %381 = vmatprep.subr.mxu0 0.0
    %382 = vmatpush1.msra.mxu0 0.0
    %383 = vmatprep.subr.mxu0 0.0
    %384 = vmatpush1.msra.mxu0 0.0
    %385 = vmatprep.subr.mxu0 0.0
    %386 = vmatpush1.msra.mxu0 0.0
    %387 = vmatprep.subr.mxu0 0.0
    %388 = vmatpush1.msra.mxu0 0.0
    %389 = vmatprep.subr.mxu0 0.0
    %390 = vmatpush1.msra.mxu0 0.0
    %391 = vmatprep.subr.mxu0 0.0
    %392 = vmatpush1.msra.mxu0 0.0
    %393 = vmatprep.subr.mxu0 0.0
    %394 = vmatpush1.msra.mxu0 0.0
    %395 = vmatprep.subr.mxu0 0.0
    %396 = vmatpush1.msra.mxu0 0.0
    %397 = vmatprep.subr.mxu0 0.0
    %398 = vmatpush1.msra.mxu0 0.0
    %399 = vmatprep.subr.mxu0 0.0
    %400 = vmatpush1.msra.mxu0 0.0
    %401 = vmatprep.subr.mxu0 0.0
    %402 = vmatpush1.msra.mxu0 0.0
    %403 = vmatprep.subr.mxu0 0.0
    %404 = vmatpush1.msra.mxu0 0.0
    %405 = vmatprep.subr.mxu0 0.0
    %406 = vmatpush1.msra.mxu0 0.0
    %407 = vmatprep.subr.mxu0 0.0
    %408 = vmatpush1.msra.mxu0 0.0
    %409 = vmatprep.subr.mxu0 0.0
    %410 = vmatpush1.msra.mxu0 0.0
    %411 = vmatprep.subr.mxu0 0.0
    %412 = vmatpush1.msra.mxu0 0.0
    %413 = vmatprep.subr.mxu0 0.0
    %414 = vmatpush1.msra.mxu0 0.0
    %415 = vmatprep.subr.mxu0 0.0
    %416 = vmatpush1.msra.mxu0 0.0
    %417 = vmatprep.subr.mxu0 0.0
    %418 = vmatpush1.msra.mxu0 0.0
    %419 = vmatprep.subr.mxu0 0.0
    %420 = vmatpush1.msra.mxu0 0.0
    %421 = vmatprep.subr.mxu0 0.0
    %422 = vmatpush1.msra.mxu0 0.0
    %423 = vmatprep.subr.mxu0 0.0
    %424 = vmatpush1.msra.mxu0 0.0
    %425 = vmatprep.subr.mxu0 0.0
    %426 = vmatpush1.msra.mxu0 0.0
    %427 = vmatprep.mubr.f32.mxu0 0.0
    %428 = vmatmul.mubr.f32.gmra.mrb[0].mxu0 %v208
    %v429 = vpop.f32.mrb[0].mxu0
    %v430 = vadd.f32 0.0, %v429
    %v431 = vpop.f32.mrb[0].mxu0
    %432 = vmatprep.mubr.f32.mxu0 0.0
    %433 = vmatmul.mubr.f32.gmra.mrb[0].mxu0 %v211
    %v434 = vpop.f32.mrb[0].mxu0
    %v435 = vadd.f32 0.0, %v434
    %v436 = vpop.f32.mrb[0].mxu0
    %437 = vdwg.mxu0
    %438 = vmatprep.subr.mxu0 0.0
    %439 = vmatpush1.msra.mxu0 %v182
    %440 = vmatprep.subr.mxu0 0.0
    %441 = vmatpush1.msra.mxu0 0.0
    %442 = vmatprep.subr.mxu0 0.0
    %443 = vmatpush1.msra.mxu0 0.0
    %444 = vmatprep.subr.mxu0 0.0
    %445 = vmatpush1.msra.mxu0 0.0
    %446 = vmatprep.subr.mxu0 0.0
    %447 = vmatpush1.msra.mxu0 0.0
    %448 = vmatprep.subr.mxu0 0.0
    %449 = vmatpush1.msra.mxu0 0.0
    %450 = vmatprep.subr.mxu0 0.0
    %451 = vmatpush1.msra.mxu0 0.0
    %452 = vmatprep.subr.mxu0 0.0
    %453 = vmatpush1.msra.mxu0 0.0
    %454 = vmatprep.subr.mxu0 0.0
    %455 = vmatpush1.msra.mxu0 0.0
    %456 = vmatprep.subr.mxu0 0.0
    %457 = vmatpush1.msra.mxu0 0.0
    %458 = vmatprep.subr.mxu0 0.0
    %459 = vmatpush1.msra.mxu0 0.0
    %460 = vmatprep.subr.mxu0 0.0
    %461 = vmatpush1.msra.mxu0 0.0
    %462 = vmatprep.subr.mxu0 0.0
    %463 = vmatpush1.msra.mxu0 0.0
    %464 = vmatprep.subr.mxu0 0.0
    %465 = vmatpush1.msra.mxu0 0.0
    %466 = vmatprep.subr.mxu0 0.0
    %467 = vmatpush1.msra.mxu0 0.0
    %468 = vmatprep.subr.mxu0 0.0
    %469 = vmatpush1.msra.mxu0 0.0
    %470 = vmatprep.subr.mxu0 0.0
    %471 = vmatpush1.msra.mxu0 0.0
    %472 = vmatprep.subr.mxu0 0.0
    %473 = vmatpush1.msra.mxu0 0.0
    %474 = vmatprep.subr.mxu0 0.0
    %475 = vmatpush1.msra.mxu0 0.0
    %476 = vmatprep.subr.mxu0 0.0
    %477 = vmatpush1.msra.mxu0 0.0
    %478 = vmatprep.subr.mxu0 0.0
    %479 = vmatpush1.msra.mxu0 0.0
    %480 = vmatprep.subr.mxu0 0.0
    %481 = vmatpush1.msra.mxu0 0.0
    %482 = vmatprep.subr.mxu0 0.0
    %483 = vmatpush1.msra.mxu0 0.0
    %484 = vmatprep.subr.mxu0 0.0
    %485 = vmatpush1.msra.mxu0 0.0
    %486 = vmatprep.subr.mxu0 0.0
    %487 = vmatpush1.msra.mxu0 0.0
    %488 = vmatprep.subr.mxu0 0.0
    %489 = vmatpush1.msra.mxu0 0.0
    %490 = vmatprep.subr.mxu0 0.0
    %491 = vmatpush1.msra.mxu0 0.0
    %492 = vmatprep.subr.mxu0 0.0
    %493 = vmatpush1.msra.mxu0 0.0
    %494 = vmatprep.subr.mxu0 0.0
    %495 = vmatpush1.msra.mxu0 0.0
    %496 = vmatprep.subr.mxu0 0.0
    %497 = vmatpush1.msra.mxu0 0.0
    %498 = vmatprep.subr.mxu0 0.0
    %499 = vmatpush1.msra.mxu0 0.0
    %500 = vmatprep.subr.mxu0 0.0
    %501 = vmatpush1.msra.mxu0 0.0
    %502 = vmatprep.mubr.f32.mxu0 0.0
    %503 = vmatmul.mubr.f32.gmra.mrb[0].mxu0 %v208
    %v504 = vpop.f32.mrb[0].mxu0
    %v505 = vadd.f32 0.0, %v504
    %v506 = vpop.f32.mrb[0].mxu0
    %507 = vmatprep.mubr.f32.mxu0 0.0
    %508 = vmatmul.mubr.f32.gmra.mrb[0].mxu0 %v211
    %v509 = vpop.f32.mrb[0].mxu0
    %v510 = vadd.f32 0.0, %v509
    %v511 = vpop.f32.mrb[0].mxu0
    %512 = vdwg.mxu0
    %513 = vmatprep.subr.mxu0 0.0
    %514 = vmatpush1.msra.mxu0 %v187
    %515 = vmatprep.subr.mxu0 0.0
    %516 = vmatpush1.msra.mxu0 0.0
    %517 = vmatprep.subr.mxu0 0.0
    %518 = vmatpush1.msra.mxu0 0.0
    %519 = vmatprep.subr.mxu0 0.0
    %520 = vmatpush1.msra.mxu0 0.0
    %521 = vmatprep.subr.mxu0 0.0
    %522 = vmatpush1.msra.mxu0 0.0
    %523 = vmatprep.subr.mxu0 0.0
    %524 = vmatpush1.msra.mxu0 0.0
    %525 = vmatprep.subr.mxu0 0.0
    %526 = vmatpush1.msra.mxu0 0.0
    %527 = vmatprep.subr.mxu0 0.0
    %528 = vmatpush1.msra.mxu0 0.0
    %529 = vmatprep.subr.mxu0 0.0
    %530 = vmatpush1.msra.mxu0 0.0
    %531 = vmatprep.subr.mxu0 0.0
    %532 = vmatpush1.msra.mxu0 0.0
    %533 = vmatprep.subr.mxu0 0.0
    %534 = vmatpush1.msra.mxu0 0.0
    %535 = vmatprep.subr.mxu0 0.0
    %536 = vmatpush1.msra.mxu0 0.0
    %537 = vmatprep.subr.mxu0 0.0
    %538 = vmatpush1.msra.mxu0 0.0
    %539 = vmatprep.subr.mxu0 0.0
    %540 = vmatpush1.msra.mxu0 0.0
    %541 = vmatprep.subr.mxu0 0.0
    %542 = vmatpush1.msra.mxu0 0.0
    %543 = vmatprep.subr.mxu0 0.0
    %544 = vmatpush1.msra.mxu0 0.0
    %545 = vmatprep.subr.mxu0 0.0
    %546 = vmatpush1.msra.mxu0 0.0
    %547 = vmatprep.subr.mxu0 0.0
    %548 = vmatpush1.msra.mxu0 0.0
    %549 = vmatprep.subr.mxu0 0.0
    %550 = vmatpush1.msra.mxu0 0.0
    %551 = vmatprep.subr.mxu0 0.0
    %552 = vmatpush1.msra.mxu0 0.0
    %553 = vmatprep.subr.mxu0 0.0
    %554 = vmatpush1.msra.mxu0 0.0
    %555 = vmatprep.subr.mxu0 0.0
    %556 = vmatpush1.msra.mxu0 0.0
    %557 = vmatprep.subr.mxu0 0.0
    %558 = vmatpush1.msra.mxu0 0.0
    %559 = vmatprep.subr.mxu0 0.0
    %560 = vmatpush1.msra.mxu0 0.0
    %561 = vmatprep.subr.mxu0 0.0
    %562 = vmatpush1.msra.mxu0 0.0
    %563 = vmatprep.subr.mxu0 0.0
    %564 = vmatpush1.msra.mxu0 0.0
    %565 = vmatprep.subr.mxu0 0.0
    %566 = vmatpush1.msra.mxu0 0.0
    %567 = vmatprep.subr.mxu0 0.0
    %568 = vmatpush1.msra.mxu0 0.0
    %569 = vmatprep.subr.mxu0 0.0
    %570 = vmatpush1.msra.mxu0 0.0
    %571 = vmatprep.subr.mxu0 0.0
    %572 = vmatpush1.msra.mxu0 0.0
    %573 = vmatprep.subr.mxu0 0.0
    %574 = vmatpush1.msra.mxu0 0.0
    %575 = vmatprep.subr.mxu0 0.0
    %576 = vmatpush1.msra.mxu0 0.0
    %577 = vmatprep.mubr.f32.mxu0 0.0
    %578 = vmatmul.mubr.f32.gmra.mrb[0].mxu0 %v208
    %v579 = vpop.f32.mrb[0].mxu0
    %v580 = vadd.f32 0.0, %v579
    %v581 = vpop.f32.mrb[0].mxu0
    %582 = vmatprep.mubr.f32.mxu0 0.0
    %583 = vmatmul.mubr.f32.gmra.mrb[0].mxu0 %v211
    %v584 = vpop.f32.mrb[0].mxu0
    %v585 = vadd.f32 0.0, %v584
    %v586 = vpop.f32.mrb[0].mxu0
    %587 = vdwg.mxu0
    %588 = vmatprep.subr.mxu0 0.0
    %589 = vmatpush1.msra.mxu0 %v192
    %590 = vmatprep.subr.mxu0 0.0
    %591 = vmatpush1.msra.mxu0 0.0
    %592 = vmatprep.subr.mxu0 0.0
    %593 = vmatpush1.msra.mxu0 0.0
    %594 = vmatprep.subr.mxu0 0.0
    %595 = vmatpush1.msra.mxu0 0.0
    %596 = vmatprep.subr.mxu0 0.0
    %597 = vmatpush1.msra.mxu0 0.0
    %598 = vmatprep.subr.mxu0 0.0
    %599 = vmatpush1.msra.mxu0 0.0
    %600 = vmatprep.subr.mxu0 0.0
    %601 = vmatpush1.msra.mxu0 0.0
    %602 = vmatprep.subr.mxu0 0.0
    %603 = vmatpush1.msra.mxu0 0.0
    %604 = vmatprep.subr.mxu0 0.0
    %605 = vmatpush1.msra.mxu0 0.0
    %606 = vmatprep.subr.mxu0 0.0
    %607 = vmatpush1.msra.mxu0 0.0
    %608 = vmatprep.subr.mxu0 0.0
    %609 = vmatpush1.msra.mxu0 0.0
    %610 = vmatprep.subr.mxu0 0.0
    %611 = vmatpush1.msra.mxu0 0.0
    %612 = vmatprep.subr.mxu0 0.0
    %613 = vmatpush1.msra.mxu0 0.0
    %614 = vmatprep.subr.mxu0 0.0
    %615 = vmatpush1.msra.mxu0 0.0
    %616 = vmatprep.subr.mxu0 0.0
    %617 = vmatpush1.msra.mxu0 0.0
    %618 = vmatprep.subr.mxu0 0.0
    %619 = vmatpush1.msra.mxu0 0.0
    %620 = vmatprep.subr.mxu0 0.0
    %621 = vmatpush1.msra.mxu0 0.0
    %622 = vmatprep.subr.mxu0 0.0
    %623 = vmatpush1.msra.mxu0 0.0
    %624 = vmatprep.subr.mxu0 0.0
    %625 = vmatpush1.msra.mxu0 0.0
    %626 = vmatprep.subr.mxu0 0.0
    %627 = vmatpush1.msra.mxu0 0.0
    %628 = vmatprep.subr.mxu0 0.0
    %629 = vmatpush1.msra.mxu0 0.0
    %630 = vmatprep.subr.mxu0 0.0
    %631 = vmatpush1.msra.mxu0 0.0
    %632 = vmatprep.subr.mxu0 0.0
    %633 = vmatpush1.msra.mxu0 0.0
    %634 = vmatprep.subr.mxu0 0.0
    %635 = vmatpush1.msra.mxu0 0.0
    %636 = vmatprep.subr.mxu0 0.0
    %637 = vmatpush1.msra.mxu0 0.0
    %638 = vmatprep.subr.mxu0 0.0
    %639 = vmatpush1.msra.mxu0 0.0
    %640 = vmatprep.subr.mxu0 0.0
    %641 = vmatpush1.msra.mxu0 0.0
    %642 = vmatprep.subr.mxu0 0.0
    %643 = vmatpush1.msra.mxu0 0.0
    %644 = vmatprep.subr.mxu0 0.0
    %645 = vmatpush1.msra.mxu0 0.0
    %646 = vmatprep.subr.mxu0 0.0
    %647 = vmatpush1.msra.mxu0 0.0
    %648 = vmatprep.subr.mxu0 0.0
    %649 = vmatpush1.msra.mxu0 0.0
    %650 = vmatprep.subr.mxu0 0.0
    %651 = vmatpush1.msra.mxu0 0.0
    %652 = vmatprep.mubr.f32.mxu0 0.0
    %653 = vmatmul.mubr.f32.gmra.mrb[0].mxu0 %v208
    %v654 = vpop.f32.mrb[0].mxu0
    %v655 = vadd.f32 0.0, %v654
    %v656 = vpop.f32.mrb[0].mxu0
    %657 = vmatprep.mubr.f32.mxu0 0.0
    %658 = vmatmul.mubr.f32.gmra.mrb[0].mxu0 %v211
    %v659 = vpop.f32.mrb[0].mxu0
    %v660 = vadd.f32 0.0, %v659
    %v661 = vpop.f32.mrb[0].mxu0
    %662 = vdwg.mxu0
    %663 = vmatprep.subr.mxu0 0.0
    %664 = vmatpush1.msra.mxu0 %v197
    %665 = vmatprep.subr.mxu0 0.0
    %666 = vmatpush1.msra.mxu0 0.0
    %667 = vmatprep.subr.mxu0 0.0
    %668 = vmatpush1.msra.mxu0 0.0
    %669 = vmatprep.subr.mxu0 0.0
    %670 = vmatpush1.msra.mxu0 0.0
    %671 = vmatprep.subr.mxu0 0.0
    %672 = vmatpush1.msra.mxu0 0.0
    %673 = vmatprep.subr.mxu0 0.0
    %674 = vmatpush1.msra.mxu0 0.0
    %675 = vmatprep.subr.mxu0 0.0
    %676 = vmatpush1.msra.mxu0 0.0
    %677 = vmatprep.subr.mxu0 0.0
    %678 = vmatpush1.msra.mxu0 0.0
    %679 = vmatprep.subr.mxu0 0.0
    %680 = vmatpush1.msra.mxu0 0.0
    %681 = vmatprep.subr.mxu0 0.0
    %682 = vmatpush1.msra.mxu0 0.0
    %683 = vmatprep.subr.mxu0 0.0
    %684 = vmatpush1.msra.mxu0 0.0
    %685 = vmatprep.subr.mxu0 0.0
    %686 = vmatpush1.msra.mxu0 0.0
    %687 = vmatprep.subr.mxu0 0.0
    %688 = vmatpush1.msra.mxu0 0.0
    %689 = vmatprep.subr.mxu0 0.0
    %690 = vmatpush1.msra.mxu0 0.0
    %691 = vmatprep.subr.mxu0 0.0
    %692 = vmatpush1.msra.mxu0 0.0
    %693 = vmatprep.subr.mxu0 0.0
    %694 = vmatpush1.msra.mxu0 0.0
    %695 = vmatprep.subr.mxu0 0.0
    %696 = vmatpush1.msra.mxu0 0.0
    %697 = vmatprep.subr.mxu0 0.0
    %698 = vmatpush1.msra.mxu0 0.0
    %699 = vmatprep.subr.mxu0 0.0
    %700 = vmatpush1.msra.mxu0 0.0
    %701 = vmatprep.subr.mxu0 0.0
    %702 = vmatpush1.msra.mxu0 0.0
    %703 = vmatprep.subr.mxu0 0.0
    %704 = vmatpush1.msra.mxu0 0.0
    %705 = vmatprep.subr.mxu0 0.0
    %706 = vmatpush1.msra.mxu0 0.0
    %707 = vmatprep.subr.mxu0 0.0
    %708 = vmatpush1.msra.mxu0 0.0
    %709 = vmatprep.subr.mxu0 0.0
    %710 = vmatpush1.msra.mxu0 0.0
    %711 = vmatprep.subr.mxu0 0.0
    %712 = vmatpush1.msra.mxu0 0.0
    %713 = vmatprep.subr.mxu0 0.0
    %714 = vmatpush1.msra.mxu0 0.0
    %715 = vmatprep.subr.mxu0 0.0
    %716 = vmatpush1.msra.mxu0 0.0
    %717 = vmatprep.subr.mxu0 0.0
    %718 = vmatpush1.msra.mxu0 0.0
    %719 = vmatprep.subr.mxu0 0.0
    %720 = vmatpush1.msra.mxu0 0.0
    %721 = vmatprep.subr.mxu0 0.0
    %722 = vmatpush1.msra.mxu0 0.0
    %723 = vmatprep.subr.mxu0 0.0
    %724 = vmatpush1.msra.mxu0 0.0
    %725 = vmatprep.subr.mxu0 0.0
    %726 = vmatpush1.msra.mxu0 0.0
    %727 = vmatprep.mubr.f32.mxu0 0.0
    %728 = vmatmul.mubr.f32.gmra.mrb[0].mxu0 %v208
    %v729 = vpop.f32.mrb[0].mxu0
    %v730 = vadd.f32 0.0, %v729
    %v731 = vpop.f32.mrb[0].mxu0
    %732 = vmatprep.mubr.f32.mxu0 0.0
    %733 = vmatmul.mubr.f32.gmra.mrb[0].mxu0 %v211
    %v734 = vpop.f32.mrb[0].mxu0
    %v735 = vadd.f32 0.0, %v734
    %v736 = vpop.f32.mrb[0].mxu0
    %737 = vdwg.mxu0
    %738 = vmatprep.subr.mxu0 0.0
    %739 = vmatpush1.msra.mxu0 %v202
    %740 = vmatprep.subr.mxu0 0.0
    %741 = vmatpush1.msra.mxu0 0.0
    %742 = vmatprep.subr.mxu0 0.0
    %743 = vmatpush1.msra.mxu0 0.0
    %744 = vmatprep.subr.mxu0 0.0
    %745 = vmatpush1.msra.mxu0 0.0
    %746 = vmatprep.subr.mxu0 0.0
    %747 = vmatpush1.msra.mxu0 0.0
    %748 = vmatprep.subr.mxu0 0.0
    %749 = vmatpush1.msra.mxu0 0.0
    %750 = vmatprep.subr.mxu0 0.0
    %751 = vmatpush1.msra.mxu0 0.0
    %752 = vmatprep.subr.mxu0 0.0
    %753 = vmatpush1.msra.mxu0 0.0
    %754 = vmatprep.subr.mxu0 0.0
    %755 = vmatpush1.msra.mxu0 0.0
    %756 = vmatprep.subr.mxu0 0.0
    %757 = vmatpush1.msra.mxu0 0.0
    %758 = vmatprep.subr.mxu0 0.0
    %759 = vmatpush1.msra.mxu0 0.0
    %760 = vmatprep.subr.mxu0 0.0
    %761 = vmatpush1.msra.mxu0 0.0
    %762 = vmatprep.subr.mxu0 0.0
    %763 = vmatpush1.msra.mxu0 0.0
    %764 = vmatprep.subr.mxu0 0.0
    %765 = vmatpush1.msra.mxu0 0.0
    %766 = vmatprep.subr.mxu0 0.0
    %767 = vmatpush1.msra.mxu0 0.0
    %768 = vmatprep.subr.mxu0 0.0
    %769 = vmatpush1.msra.mxu0 0.0
    %770 = vmatprep.subr.mxu0 0.0
    %771 = vmatpush1.msra.mxu0 0.0
    %772 = vmatprep.subr.mxu0 0.0
    %773 = vmatpush1.msra.mxu0 0.0
    %774 = vmatprep.subr.mxu0 0.0
    %775 = vmatpush1.msra.mxu0 0.0
    %776 = vmatprep.subr.mxu0 0.0
    %777 = vmatpush1.msra.mxu0 0.0
    %778 = vmatprep.subr.mxu0 0.0
    %779 = vmatpush1.msra.mxu0 0.0
    %780 = vmatprep.subr.mxu0 0.0
    %781 = vmatpush1.msra.mxu0 0.0
    %782 = vmatprep.subr.mxu0 0.0
    %783 = vmatpush1.msra.mxu0 0.0
    %784 = vmatprep.subr.mxu0 0.0
    %785 = vmatpush1.msra.mxu0 0.0
    %786 = vmatprep.subr.mxu0 0.0
    %787 = vmatpush1.msra.mxu0 0.0
    %788 = vmatprep.subr.mxu0 0.0
    %789 = vmatpush1.msra.mxu0 0.0
    %790 = vmatprep.subr.mxu0 0.0
    %791 = vmatpush1.msra.mxu0 0.0
    %792 = vmatprep.subr.mxu0 0.0
    %793 = vmatpush1.msra.mxu0 0.0
    %794 = vmatprep.subr.mxu0 0.0
    %795 = vmatpush1.msra.mxu0 0.0
    %796 = vmatprep.subr.mxu0 0.0
    %797 = vmatpush1.msra.mxu0 0.0
    %798 = vmatprep.subr.mxu0 0.0
    %799 = vmatpush1.msra.mxu0 0.0
    %800 = vmatprep.subr.mxu0 0.0
    %801 = vmatpush1.msra.mxu0 0.0
    %802 = vmatprep.mubr.f32.mxu0 0.0
    %803 = vmatmul.mubr.f32.gmra.mrb[0].mxu0 %v208
    %v804 = vpop.f32.mrb[0].mxu0
    %v805 = vadd.f32 0.0, %v804
    %v806 = vpop.f32.mrb[0].mxu0
    %807 = vmatprep.mubr.f32.mxu0 0.0
    %808 = vmatmul.mubr.f32.gmra.mrb[0].mxu0 %v211
    %v809 = vpop.f32.mrb[0].mxu0
    %v810 = vadd.f32 0.0, %v809
    %v811 = vpop.f32.mrb[0].mxu0
    %812 = vdwg.mxu0
    %v813 = vld [vmem:[#allocation2] sm:$0xff]
    %v814 = vld [vmem:[#allocation2 + $0x8] sm:$0xff]
    %v815 = vld [vmem:[#allocation2 + $0x10] sm:$0xff]
    %v816 = vld [vmem:[#allocation2 + $0x18] sm:$0xff]
    %v817 = vld [vmem:[#allocation2 + $0x20] sm:$0xff]
    %v818 = vld [vmem:[#allocation2 + $0x28] sm:$0xff]
    %v819 = vld [vmem:[#allocation2 + $0x30] sm:$0xff]
    %v820 = vld [vmem:[#allocation2 + $0x38] sm:$0xff]
    %v821 = vld [vmem:[#allocation2 + $0x40] sm:$0xff]
    %v822 = vld [vmem:[#allocation2 + $0x48] sm:$0xff]
    %v823 = vld [vmem:[#allocation2 + $0x50] sm:$0xff]
    %v824 = vld [vmem:[#allocation2 + $0x58] sm:$0xff]
    %v825 = vld [vmem:[#allocation2 + $0x60] sm:$0xff]
    %v826 = vld [vmem:[#allocation2 + $0x68] sm:$0xff]
    %v827 = vld [vmem:[#allocation2 + $0x70] sm:$0xff]
    %v828 = vld [vmem:[#allocation2 + $0x78] sm:$0xff]
    %v829 = vsub.f32 %v813, %v280
    %v830 = vsub.f32 %v814, %v285
    %v831 = vsub.f32 %v815, %v355
    %v832 = vsub.f32 %v816, %v360
    %v833 = vsub.f32 %v817, %v430
    %v834 = vsub.f32 %v818, %v435
    %v835 = vsub.f32 %v819, %v505
    %v836 = vsub.f32 %v820, %v510
    %v837 = vsub.f32 %v821, %v580
    %v838 = vsub.f32 %v822, %v585
    %v839 = vsub.f32 %v823, %v655
    %v840 = vsub.f32 %v824, %v660
    %v841 = vsub.f32 %v825, %v730
    %v842 = vsub.f32 %v826, %v735
    %v843 = vsub.f32 %v827, %v805
    %v844 = vsub.f32 %v828, %v810
    %v845 = vand.u32 2147483647, %v829
    %v846 = vand.u32 2147483647, %v830
    %v847 = vand.u32 2147483647, %v831
    %v848 = vand.u32 2147483647, %v832
    %v849 = vand.u32 2147483647, %v833
    %v850 = vand.u32 2147483647, %v834
    %v851 = vand.u32 2147483647, %v835
    %v852 = vand.u32 2147483647, %v836
    %v853 = vand.u32 2147483647, %v837
    %v854 = vand.u32 2147483647, %v838
    %v855 = vand.u32 2147483647, %v839
    %v856 = vand.u32 2147483647, %v840
    %v857 = vand.u32 2147483647, %v841
    %v858 = vand.u32 2147483647, %v842
    %v859 = vand.u32 2147483647, %v843
    %v860 = vand.u32 2147483647, %v844
    %v861 = vld [vmem:[#allocation7] sm:$0xff]
    %v862 = vld [vmem:[#allocation7 + $0x8] sm:$0xff]
    %vm863 = vcmask 130048
    %v864 = vsel %vm863, %v845, 0.0
    %v865 = vsel %vm863, %v847, 0.0
    %v866 = vadd.f32 %v864, %v865
    %v867 = vsel %vm863, %v849, 0.0
    %v868 = vadd.f32 %v866, %v867
    %v869 = vsel %vm863, %v851, 0.0
    %v870 = vadd.f32 %v868, %v869
    %v871 = vsel %vm863, %v853, 0.0
    %v872 = vadd.f32 %v870, %v871
    %v873 = vsel %vm863, %v855, 0.0
    %v874 = vadd.f32 %v872, %v873
    %v875 = vsel %vm863, %v857, 0.0
    %v876 = vadd.f32 %v874, %v875
    %v877 = vsel %vm863, %v859, 0.0
    %v878 = vadd.f32 %v876, %v877
    %v879 = vsel %vm863, %v846, 0.0
    %v880 = vsel %vm863, %v848, 0.0
    %v881 = vadd.f32 %v879, %v880
    %v882 = vsel %vm863, %v850, 0.0
    %v883 = vadd.f32 %v881, %v882
    %v884 = vsel %vm863, %v852, 0.0
    %v885 = vadd.f32 %v883, %v884
    %v886 = vsel %vm863, %v854, 0.0
    %v887 = vadd.f32 %v885, %v886
    %v888 = vsel %vm863, %v856, 0.0
    %v889 = vadd.f32 %v887, %v888
    %v890 = vsel %vm863, %v858, 0.0
    %v891 = vadd.f32 %v889, %v890
    %v892 = vsel %vm863, %v860, 0.0
    %v893 = vadd.f32 %v891, %v892
    %v894 = vadd.f32 %v861, %v878
    %v895 = vadd.f32 %v862, %v893
    %896 = vst.msk [vmem:[#allocation7] sm:$0xff] %vm863, %v894
    %897 = vst.msk [vmem:[#allocation7 + $0x8] sm:$0xff] %vm863, %v895
    // Predicated region
    $region30: #{tpu_custom_call.1} parent=1 // pred_check
      _
    $region31: #{tpu_custom_call.1} parent=1 // pred_check_branch
      %899 = sbr.rel (0) target = $region33
    $region32: #{tpu_custom_call.1} parent=1 // pred_region
      %s901 = ssub.s32 256, 256
      %902 = vsyncadd [#allocation4], %s901
      %s903 = sshll.u32 [#allocation7], 4
      %s904 = int_to_ptr.vmem [resolvable:$true] %s903
      %909 = dma.vmem_to_hbm [thread:$0]  %s904, 256, %s4, [#allocation4], 128, 128, 8
    $region33: #{tpu_custom_call.1} parent=1 // pred_fallthru
      _
    // Predicated region
    $region34: #{tpu_custom_call.1} parent=1 // pred_check
      _
    $region35: #{tpu_custom_call.1} parent=1 // pred_check_branch
      %911 = sbr.rel (0) target = $region37
    $region36: #{tpu_custom_call.1} parent=1 // pred_region
      %912 = dma.done [#allocation4], 256
    $region37: #{tpu_custom_call.1} parent=1 // pred_fallthru
      _
    %913 = vsyncpa [#allocation3], 1
    %914 = vsyncpa [#allocation6], 1
    %915 = vsyncpa [#allocation4], 1

</llo_original>
